<compile_context>
chip_gen: v5e
topology: v5e:2x2
jax: 0.10.0
libtpu: 0.0.40
codegen_flags: <defaults>
</compile_context>

<pallas_src>
import math

import jax
import jax.numpy as jnp
from jax.experimental import pallas as pl
from jax.experimental.pallas import tpu as pltpu

_LANE = 128
_TARGET_BYTES_PER_BUFFER = 4 << 20   # ~4 MiB per in/out tile
_VMEM_HEADROOM = 8 << 20             # headroom over the double-buffered set


def _abs_kernel(x_ref, o_ref):
    # Dense (tm, 128) tile; single VPU element-wise op per vreg.
    o_ref[...] = jnp.abs(x_ref[...])


def _run_abs_2d(x2d):
    """Run the abs kernel over a lane-dense (rows, 128) array."""
    rows, _ = x2d.shape
    itemsize = jnp.dtype(x2d.dtype).itemsize
    # Sublane multiple for clean vreg packing: 8 (f32) / 16 (bf16) / 32 (i8/fp8).
    mult = max(8, 32 // itemsize)

    # Dtype-aware tile rows targeting ~4 MiB per buffer.
    tm = max(mult, (_TARGET_BYTES_PER_BUFFER // (_LANE * itemsize)) // mult * mult)

    # Ensure >= 2 grid steps for mid-size inputs so the "parallel" axis can
    # shard across both TensorCores on v7x (no effect on v5e/v6e).
    if rows >= 2 * mult:
        half = pl.cdiv(rows, 2)
        tm = min(tm, pl.cdiv(half, mult) * mult)

    # Small inputs: single full-extent block (allowed even if not a multiple of 8).
    tm = min(tm, rows)
    grid = (pl.cdiv(rows, tm),)

    # Scoped-VMEM limit: 2 input + 2 output double buffers plus headroom,
    # capped well under v7x's 64 MiB physical VMEM.
    working_set = 4 * tm * _LANE * itemsize
    vmem_limit = min(max(working_set + _VMEM_HEADROOM, 16 << 20), 48 << 20)

    return pl.pallas_call(
        _abs_kernel,
        out_shape=jax.ShapeDtypeStruct(x2d.shape, x2d.dtype),
        grid_spec=pltpu.PrefetchScalarGridSpec(
            num_scalar_prefetch=0,
            grid=grid,
            in_specs=[pl.BlockSpec((tm, _LANE), lambda i: (i, 0))],
            out_specs=pl.BlockSpec((tm, _LANE), lambda i: (i, 0)),
        ),
        compiler_params=pltpu.CompilerParams(
            dimension_semantics=("parallel",),
            vmem_limit_bytes=vmem_limit,
        ),
    )(x2d)


@jax.jit
def normal_shader(surface_normals):
    shape = surface_normals.shape
    total = math.prod(shape)
    rows = total // _LANE
    rem = total % _LANE

    if rows == 0:
        # Tiny input (< 128 elements): not worth a kernel launch.
        return jnp.abs(surface_normals)

    flat = surface_normals.reshape(-1)

    if rem == 0:
        # Common case: contiguous reshape to (rows, 128) is free; no pad/slice.
        return _run_abs_2d(flat.reshape(rows, _LANE)).reshape(shape)

    # Ragged case: kernel over the lane-aligned prefix, plain abs on the
    # <128-element tail. Avoids full-array pad + full-array slice.
    full = rows * _LANE
    main = _run_abs_2d(flat[:full].reshape(rows, _LANE)).reshape(-1)
    tail = jnp.abs(flat[full:])
    return jnp.concatenate([main, tail]).reshape(shape)


def _reference(surface_normals):
    return jnp.abs(surface_normals)


if __name__ == "__main__":
    key = jax.random.PRNGKey(0)

    # Shapes consistent with a surface-normal image: (B, H, W, C=3).
    B, H, W, C = 2, 16, 16, 3
    k0, k1 = jax.random.split(key)

    sn = jax.random.normal(k0, (B, H, W, C), dtype=jnp.float32)
    sn = sn / jnp.linalg.norm(sn, axis=-1, keepdims=True)

    out = jax.block_until_ready(normal_shader(sn))
    assert out.shape == (B, H, W, C), out.shape
    assert jnp.array_equal(out, _reference(sn)), "mismatch vs reference (aligned)"

    # Also exercise the ragged (total % 128 != 0) path once.
    sn_ragged = jax.random.normal(k1, (2, 5, 7, 3), dtype=jnp.float32)
    out_r = jax.block_until_ready(normal_shader(sn_ragged))
    assert out_r.shape == sn_ragged.shape
    assert jnp.array_equal(out_r, _reference(sn_ragged)), "mismatch vs reference (ragged)"

    print("KERNEL_OK")
</pallas_src>

<mosaic_0001>
module attributes {stable_mosaic.version = 11 : i64} {
  func.func @_abs_kernel(%arg0: i32, %arg1: memref<12x128xf32, #tpu.memory_space<vmem>>, %arg2: memref<12x128xf32, #tpu.memory_space<vmem>>) attributes {dimension_semantics = [#tpu.dimension_semantics<parallel>], iteration_bounds = array<i64: 1>, scalar_prefetch = 0 : i64, scratch_operands = 0 : i64, tpu.core_type = #tpu.core_type<tc>, window_params = [{transform_indices = @transform_0, window_bounds = array<i64: 12, 128>}, {transform_indices = @transform_1, window_bounds = array<i64: 12, 128>}]} {
    %c0 = arith.constant 0 : index
    %c0_0 = arith.constant 0 : index
    %0 = vector.load %arg1[%c0, %c0_0] : memref<12x128xf32, #tpu.memory_space<vmem>>, vector<12x128xf32>
    %1 = math.absf %0 : vector<12x128xf32>
    %c0_1 = arith.constant 0 : index
    %c0_2 = arith.constant 0 : index
    %2 = vector.load %arg2[%c0_1, %c0_2] : memref<12x128xf32, #tpu.memory_space<vmem>>, vector<12x128xf32>
    tpu.vector_store %arg2[%c0_1, %c0_2], %1 {strides = array<i32>} : memref<12x128xf32, #tpu.memory_space<vmem>>, vector<12x128xf32>,
    return
  }
  func.func @transform_0(%arg0: i32) -> (i32, i32) {
    %c0_i32 = arith.constant 0 : i32
    %c0_i32_0 = arith.constant 0 : i32
    return %arg0, %c0_i32 : i32, i32
  }
  func.func @transform_1(%arg0: i32) -> (i32, i32) {
    %c0_i32 = arith.constant 0 : i32
    %c0_i32_0 = arith.constant 0 : i32
    return %arg0, %c0_i32 : i32, i32
  }
}

</mosaic_0001>

<llo_original>
// kernel: normal_shader.1
$region0: #{normal_shader.1}
  #allocation0 [shape = 'u32[]', space=smem, size = 0x4, offset = 0x4, fixed_abs, tag = 'smem constant byte address 0x4 - core index']
  #allocation1 [shape = 'u32[72,128]{1,0:T(1,128)}', space=vmem, size = 0x9000, scoped, tag = 'internal scratch']
  %s0 = inlined_call_operand.vmem [shape: f32[12,128], index: 0, kind: input, shape index: {}]
  %s1 = inlined_call_operand.vmem [shape: f32[12,128], index: 1, kind: output, shape index: {}]
  %s2 = sld [smem:[#allocation0]]
  $region14: #{normal_shader.1} parent=0
    _
  %s4 = ssub.s32 1, %s2
  %s5 = scalar_select 0, %s4, %s2
  // Predicated region
  $region2: #{normal_shader.1} parent=0 // pred_check
    _
  $region3: #{normal_shader.1} parent=0 // pred_check_branch
    %7 = sbr.rel (0) target = $region5
  $region4: #{normal_shader.1} parent=0 // pred_region
    _
  $region5: #{normal_shader.1} parent=0 // pred_fallthru
    _
  %v8 = vld [vmem:[%s0] sm:$0xff]
  %v9 = vld [vmem:[%s0 + $0x8] sm:$0xf]
  %v10 = vand.u32 2147483647, %v8
  %v11 = vand.u32 2147483647, %v9
  %12 = vst [vmem:[%s1] sm:$0xff] %v10
  %13 = vst [vmem:[%s1 + $0x8] sm:$0xf] %v11
  // Predicated region
  $region6: #{normal_shader.1} parent=0 // pred_check
    _
  $region7: #{normal_shader.1} parent=0 // pred_check_branch
    %15 = sbr.rel (0) target = $region9
  $region8: #{normal_shader.1} parent=0 // pred_region
    _
  $region9: #{normal_shader.1} parent=0 // pred_fallthru
    _
  // Predicated region
  $region10: #{normal_shader.1} parent=0 // pred_check
    _
  $region11: #{normal_shader.1} parent=0 // pred_check_branch
    %17 = sbr.rel (0) target = $region13
  $region12: #{normal_shader.1} parent=0 // pred_region
    _
  $region13: #{normal_shader.1} parent=0 // pred_fallthru
    _

</llo_original>
